<compile_context>
chip_gen: v5e
topology: v5e:2x2
jax: 0.10.0
libtpu: 0.0.40
codegen_flags: <defaults>
</compile_context>

<pallas_src>
import jax
import jax.numpy as jnp
from jax.experimental import pallas as pl
from jax.experimental.pallas import tpu as pltpu


def _round_up(x: int, m: int) -> int:
    return ((x + m - 1) // m) * m


def _detect_vmem_capacity_bytes() -> int:
    """Per-TensorCore VMEM capacity; conservative default (v7x: 64 MiB/TC)."""
    try:
        info = pltpu.get_tpu_info()
        cap = getattr(info, "vmem_capacity_bytes", None)
        if cap:
            return int(cap)
    except Exception:
        pass
    return 64 * 1024 * 1024


# ------------------------------- kernels -------------------------------------

def _make_wresident_kernel(compute_dtype):
    """Weight-resident path: one (tm, N) output tile, full-K MXU matmul."""
    def kernel(x_ref, w_ref, o_ref):
        x = x_ref[...]
        if compute_dtype is not None:
            x = x.astype(compute_dtype)          # per-tile cast in VMEM (no HBM pass)
        o_ref[...] = jnp.dot(
            x, w_ref[...], preferred_element_type=jnp.float32
        ).astype(o_ref.dtype)
    return kernel


def _make_tiled_kernel_inplace(compute_dtype):
    """General path, f32 output: accumulate directly into the resident output block."""
    def kernel(x_ref, w_ref, o_ref):
        @pl.when(pl.program_id(2) == 0)
        def _():
            o_ref[...] = jnp.zeros_like(o_ref)

        x = x_ref[...]
        if compute_dtype is not None:
            x = x.astype(compute_dtype)
        o_ref[...] += jnp.dot(x, w_ref[...], preferred_element_type=jnp.float32)
    return kernel


def _make_tiled_kernel_scratch(compute_dtype):
    """General path, non-f32 output: f32 scratch accumulator, cast on last K step."""
    def kernel(x_ref, w_ref, o_ref, acc_ref):
        @pl.when(pl.program_id(2) == 0)
        def _():
            acc_ref[...] = jnp.zeros_like(acc_ref)

        x = x_ref[...]
        if compute_dtype is not None:
            x = x.astype(compute_dtype)
        acc_ref[...] += jnp.dot(x, w_ref[...], preferred_element_type=jnp.float32)

        @pl.when(pl.program_id(2) == pl.num_programs(2) - 1)
        def _():
            o_ref[...] = acc_ref[...].astype(o_ref.dtype)
    return kernel


# ------------------------------- wrapper --------------------------------------

def vanilla_speaker_layer(
    x: jax.Array,
    weights: jax.Array,
    *,
    tm: int = 1024,
    tn: int = 1024,
    tk: int = 2048,
    compute_dtype=None,              # e.g. jnp.bfloat16: MXU bf16 operands, f32 accumulation
    weight_resident_bytes=None,      # default: VMEM/4 (32 MiB v5e/v6e, 16 MiB v7x)
    vmem_cap_bytes=None,             # default: 3/4 of physical VMEM per TC
) -> jax.Array:
    """out = x @ weights, matching torch.matmul(x, self.weights)."""
    in_dim, out_dim = weights.shape
    assert x.shape[-1] == in_dim, (x.shape, weights.shape)

    lead = x.shape[:-1]
    M = 1
    for d in lead:
        M *= d
    K, N = in_dim, out_dim
    out_dtype = x.dtype

    # --------- generation-aware VMEM sizing (v5e/v6e: 128 MiB/TC, v7x: 64 MiB/TC) ---------
    vmem_phys = _detect_vmem_capacity_bytes()
    if vmem_cap_bytes is None:
        vmem_cap_bytes = (3 * vmem_phys) // 4          # 96 MiB on 128 MiB parts, 48 MiB on v7x
    if weight_resident_bytes is None:
        weight_resident_bytes = vmem_phys // 4         # 32 MiB v5e/v6e, 16 MiB v7x

    # --------- operand prep: x stays native dtype; only W is pre-cast (copied once) ---------
    x2d = x.reshape(M, K)
    w2d = weights
    if compute_dtype is not None:
        w2d = w2d.astype(compute_dtype)

    # Lane-dense output: pad tiny out_dim to 128 zero columns, slice afterwards.
    Np = N
    if N < 128:
        Np = 128
        w2d = jnp.pad(w2d, ((0, 0), (0, Np - N)))

    x_bytes = jnp.dtype(x2d.dtype).itemsize
    w_bytes = jnp.dtype(w2d.dtype).itemsize
    out_bytes = jnp.dtype(out_dtype).itemsize
    # Sublane minimum over both the streamed input and the output/accumulator dtypes.
    sub = max(8, 32 // x_bytes, 32 // out_bytes)

    def _shrink_rows(t):
        # Halve while staying MXU-friendly: multiples of 256, then 128, then sublane.
        t //= 2
        for a in (256, 128, sub):
            if t >= a:
                return (t // a) * a
        return sub

    # ---------------- fast path: W resident in VMEM, K collapsed ----------------
    w_res_bytes = K * Np * w_bytes
    tm_fast = min(tm, _round_up(M, sub))

    def _fast_vmem(tm_):
        # x: double-buffered; W: SINGLE-buffered (Buffered(1), constant index_map
        # -> one DMA); out: double-buffered.
        return 2 * tm_ * K * x_bytes + K * Np * w_bytes + 2 * tm_ * Np * out_bytes

    while tm_fast > sub and _fast_vmem(tm_fast) > vmem_cap_bytes:
        nt = _shrink_rows(tm_fast)
        if nt == tm_fast:
            break
        tm_fast = nt

    # Megacore (v7x, 2 TCs): make sure the "parallel" M axis has >= 2 blocks.
    if M >= 256 and pl.cdiv(M, tm_fast) < 2:
        tm_fast = _round_up(pl.cdiv(M, 2), 128)

    if w_res_bytes <= weight_resident_bytes and _fast_vmem(tm_fast) <= vmem_cap_bytes:
        grid_m = pl.cdiv(M, tm_fast)

        def _call_fast(single_buffer_w):
            w_kwargs = dict(pipeline_mode=pl.Buffered(1)) if single_buffer_w else {}
            return pl.pallas_call(
                _make_wresident_kernel(compute_dtype),
                out_shape=jax.ShapeDtypeStruct((M, Np), out_dtype),
                grid_spec=pltpu.PrefetchScalarGridSpec(
                    num_scalar_prefetch=0,
                    grid=(grid_m,),
                    in_specs=[
                        pl.BlockSpec((tm_fast, K), lambda i: (i, 0)),
                        # constant block index -> DMA dedup'd: W copied in once
                        pl.BlockSpec((K, Np), lambda i: (0, 0), **w_kwargs),
                    ],
                    out_specs=pl.BlockSpec((tm_fast, Np), lambda i: (i, 0)),
                ),
                compiler_params=pltpu.CompilerParams(
                    dimension_semantics=("parallel",),
                    vmem_limit_bytes=int(vmem_cap_bytes),
                ),
                cost_estimate=pl.CostEstimate(
                    flops=2 * M * Np * K,
                    transcendentals=0,
                    bytes_accessed=M * K * x_bytes + K * Np * w_bytes + M * Np * out_bytes,
                ),
            )(x2d, w2d)

        try:
            out2d = _call_fast(True)
        except Exception:
            # Fallback if single-buffered (Buffered(1)) specs are rejected by this build.
            out2d = _call_fast(False)

        if Np != N:
            out2d = out2d[:, :N]
        return out2d.reshape(*lead, N)

    # ---------------- general path: (M, N, K) tiled, K-last reduction ----------------
    # Prefer full K (fewest accumulator round-trips, esp. v5e); else the largest
    # 128-multiple <= tk dividing K; else (rare ragged large K) zero-pad K --
    # zero weight rows make the padded contributions exact zeros.
    Kp = K
    if K <= tk:
        tk_eff = K
    else:
        tk_eff = None
        start = (min(tk, K) // 128) * 128
        for cand in range(start, 127, -128):
            if K % cand == 0:
                tk_eff = cand
                break
        if tk_eff is None:
            tk_eff = 256
            Kp = _round_up(K, tk_eff)
            x2d = jnp.pad(x2d, ((0, 0), (0, Kp - K)))
            w2d = jnp.pad(w2d, ((0, Kp - K), (0, 0)))

    tn_eff = Np if Np <= tn else (tn // 128) * 128
    tm_eff = min(tm, _round_up(M, sub))

    acc_in_place = jnp.dtype(out_dtype) == jnp.dtype(jnp.float32)

    def _gen_vmem(tm_, tn_, tk_):
        b = 2 * tm_ * tk_ * x_bytes + 2 * tk_ * tn_ * w_bytes + 2 * tm_ * tn_ * out_bytes
        if not acc_in_place:
            b += tm_ * tn_ * 4
        return b

    # Shrink order: tk first (HBM-traffic-neutral, floor 256), then tm (doubles W
    # refetch), then tn (doubles x refetch); sublane rounding only as last resort.
    while _gen_vmem(tm_eff, tn_eff, tk_eff) > vmem_cap_bytes:
        if tk_eff >= 512 and (tk_eff // 2) % 128 == 0 and Kp % (tk_eff // 2) == 0:
            tk_eff //= 2
        elif tm_eff > 256:
            tm_eff = max(256, ((tm_eff // 2) // 256) * 256)
        elif tn_eff > 256 and tn_eff % 256 == 0:
            tn_eff //= 2
        elif tm_eff > sub:
            tm_eff = _round_up(max(sub, tm_eff // 2), sub)
        else:
            break

    gm, gn, gk = pl.cdiv(M, tm_eff), pl.cdiv(Np, tn_eff), Kp // tk_eff
    grid = (gm, gn, gk)
    in_specs = [
        pl.BlockSpec((tm_eff, tk_eff), lambda i, j, k: (i, k)),
        pl.BlockSpec((tk_eff, tn_eff), lambda i, j, k: (k, j)),
    ]
    out_spec = pl.BlockSpec((tm_eff, tn_eff), lambda i, j, k: (i, j))
    common = dict(
        out_shape=jax.ShapeDtypeStruct((M, Np), out_dtype),
        compiler_params=pltpu.CompilerParams(
            dimension_semantics=("parallel", "parallel", "arbitrary"),
            vmem_limit_bytes=int(vmem_cap_bytes),
        ),
        cost_estimate=pl.CostEstimate(
            flops=2 * M * Np * Kp,
            transcendentals=0,
            # Operand refetch: x re-read per N-block, W re-read per M-block.
            bytes_accessed=M * Kp * gn * x_bytes + Kp * Np * gm * w_bytes + M * Np * out_bytes,
        ),
    )

    if acc_in_place:
        out2d = pl.pallas_call(
            _make_tiled_kernel_inplace(compute_dtype),
            grid_spec=pltpu.PrefetchScalarGridSpec(
                num_scalar_prefetch=0, grid=grid,
                in_specs=in_specs, out_specs=out_spec,
            ),
            **common,
        )(x2d, w2d)
    else:
        out2d = pl.pallas_call(
            _make_tiled_kernel_scratch(compute_dtype),
            grid_spec=pltpu.PrefetchScalarGridSpec(
                num_scalar_prefetch=0, grid=grid,
                in_specs=in_specs, out_specs=out_spec,
                scratch_shapes=[pltpu.VMEM((tm_eff, tn_eff), jnp.float32)],
            ),
            **common,
        )(x2d, w2d)

    if Np != N:
        out2d = out2d[:, :N]
    return out2d.reshape(*lead, N)


def init_vanilla_speaker_layer(key, in_dim: int, out_dim: int, dtype=jnp.float32):
    """Matches torch.normal(zeros, 0.01*ones) initialization."""
    return 0.01 * jax.random.normal(key, (in_dim, out_dim), dtype=dtype)


if __name__ == "__main__":
    key = jax.random.PRNGKey(0)
    k_x, k_w = jax.random.split(key)

    batch, seq, in_dim, out_dim = 2, 8, 32, 16
    x = jax.random.normal(k_x, (batch, seq, in_dim), dtype=jnp.float32)
    weights = init_vanilla_speaker_layer(k_w, in_dim, out_dim)

    ref = jnp.matmul(x, weights)

    # Fast path (weight-resident, K collapsed) -- the one real speaker heads hit.
    out_fast = jax.block_until_ready(vanilla_speaker_layer(x, weights))
    assert out_fast.shape == (batch, seq, out_dim), out_fast.shape
    assert jnp.allclose(out_fast, ref, atol=1e-5, rtol=1e-5)

    # General tiled path (forced by disabling weight residency) -- same semantics.
    out_gen = jax.block_until_ready(
        vanilla_speaker_layer(x, weights, weight_resident_bytes=0)
    )
    assert out_gen.shape == (batch, seq, out_dim), out_gen.shape
    assert jnp.allclose(out_gen, ref, atol=1e-5, rtol=1e-5)

    # bf16 MXU operands with f32 accumulation; x cast happens per-tile inside the kernel.
    out_bf16 = jax.block_until_ready(
        vanilla_speaker_layer(x, weights, compute_dtype=jnp.bfloat16)
    )
    assert out_bf16.shape == (batch, seq, out_dim), out_bf16.shape
    assert jnp.allclose(out_bf16, ref, atol=1e-2, rtol=1e-2)

    print("KERNEL_OK")
</pallas_src>

<mosaic_0001>
module attributes {stable_mosaic.version = 11 : i64} {
  func.func @kernel(%arg0: i32, %arg1: memref<16x32xf32, #tpu.memory_space<vmem>>, %arg2: memref<32x128xf32, #tpu.memory_space<vmem>>, %arg3: memref<16x128xf32, #tpu.memory_space<vmem>>) attributes {dimension_semantics = [#tpu.dimension_semantics<parallel>], iteration_bounds = array<i64: 1>, scalar_prefetch = 0 : i64, scratch_operands = 0 : i64, tpu.core_type = #tpu.core_type<tc>, window_params = [{transform_indices = @transform_0, window_bounds = array<i64: 16, 32>}, {pipeline_mode = #tpu.pipeline_mode<synchronous>, transform_indices = @transform_1, window_bounds = array<i64: 32, 128>}, {transform_indices = @transform_2, window_bounds = array<i64: 16, 128>}]} {
    %c0 = arith.constant 0 : index
    %c0_0 = arith.constant 0 : index
    %0 = vector.load %arg1[%c0, %c0_0] : memref<16x32xf32, #tpu.memory_space<vmem>>, vector<16x32xf32>
    %c0_1 = arith.constant 0 : index
    %c0_2 = arith.constant 0 : index
    %1 = vector.load %arg2[%c0_1, %c0_2] : memref<32x128xf32, #tpu.memory_space<vmem>>, vector<32x128xf32>
    %cst = arith.constant dense<0.000000e+00> : vector<16x128xf32>
    %2 = tpu.matmul %0, %1, %cst {dimension_numbers = #tpu.dot_dimension_numbers<[1], [0], [0], [1], [0, 0, 1, 1], [], []>} : vector<16x32xf32>, vector<32x128xf32>, vector<16x128xf32> -> vector<16x128xf32>
    %c0_3 = arith.constant 0 : index
    %c0_4 = arith.constant 0 : index
    %3 = vector.load %arg3[%c0_3, %c0_4] : memref<16x128xf32, #tpu.memory_space<vmem>>, vector<16x128xf32>
    tpu.vector_store %arg3[%c0_3, %c0_4], %2 {strides = array<i32>} : memref<16x128xf32, #tpu.memory_space<vmem>>, vector<16x128xf32>,
    return
  }
  func.func @transform_0(%arg0: i32) -> (i32, i32) {
    %c0_i32 = arith.constant 0 : i32
    %c0_i32_0 = arith.constant 0 : i32
    return %arg0, %c0_i32 : i32, i32
  }
  func.func @transform_1(%arg0: i32) -> (i32, i32) {
    %c0_i32 = arith.constant 0 : i32
    %c0_i32_0 = arith.constant 0 : i32
    %c0_i32_1 = arith.constant 0 : i32
    return %c0_i32, %c0_i32_0 : i32, i32
  }
  func.func @transform_2(%arg0: i32) -> (i32, i32) {
    %c0_i32 = arith.constant 0 : i32
    %c0_i32_0 = arith.constant 0 : i32
    return %arg0, %c0_i32 : i32, i32
  }
}

module attributes {stable_mosaic.version = 11 : i64} {
  func.func @kernel(%arg0: i32, %arg1: memref<16x32xf32, #tpu.memory_space<vmem>>, %arg2: memref<32x128xf32, #tpu.memory_space<vmem>>, %arg3: memref<16x128xf32, #tpu.memory_space<vmem>>) attributes {dimension_semantics = [#tpu.dimension_semantics<parallel>], iteration_bounds = array<i64: 1>, scalar_prefetch = 0 : i64, scratch_operands = 0 : i64, tpu.core_type = #tpu.core_type<tc>, window_params = [{transform_indices = @transform_0, window_bounds = array<i64: 16, 32>}, {pipeline_mode = #tpu.pipeline_mode<synchronous>, transform_indices = @transform_1, window_bounds = array<i64: 32, 128>}, {transform_indices = @transform_2, window_bounds = array<i64: 16, 128>}]} {
    %c0 = arith.constant 0 : index
    %c0_0 = arith.constant 0 : index
    %0 = vector.load %arg1[%c0, %c0_0] : memref<16x32xf32, #tpu.memory_space<vmem>>, vector<16x32xf32>
    %c0_1 = arith.constant 0 : index
    %c0_2 = arith.constant 0 : index
    %1 = vector.load %arg2[%c0_1, %c0_2] : memref<32x128xf32, #tpu.memory_space<vmem>>, vector<32x128xf32>
    %cst = arith.constant dense<0.000000e+00> : vector<16x128xf32>
    %2 = tpu.matmul %0, %1, %cst {dimension_numbers = #tpu.dot_dimension_numbers<[1], [0], [0], [1], [0, 0, 1, 1], [], []>} : vector<16x32xf32>, vector<32x128xf32>, vector<16x128xf32> -> vector<16x128xf32>
    %c0_3 = arith.constant 0 : index
    %c0_4 = arith.constant 0 : index
    %3 = vector.load %arg3[%c0_3, %c0_4] : memref<16x128xf32, #tpu.memory_space<vmem>>, vector<16x128xf32>
    tpu.vector_store %arg3[%c0_3, %c0_4], %2 {strides = array<i32>} : memref<16x128xf32, #tpu.memory_space<vmem>>, vector<16x128xf32>,
    return
  }
  func.func @transform_0(%arg0: i32) -> (i32, i32) {
    %c0_i32 = arith.constant 0 : i32
    %c0_i32_0 = arith.constant 0 : i32
    return %arg0, %c0_i32 : i32, i32
  }
  func.func @transform_1(%arg0: i32) -> (i32, i32) {
    %c0_i32 = arith.constant 0 : i32
    %c0_i32_0 = arith.constant 0 : i32
    %c0_i32_1 = arith.constant 0 : i32
    return %c0_i32, %c0_i32_0 : i32, i32
  }
  func.func @transform_2(%arg0: i32) -> (i32, i32) {
    %c0_i32 = arith.constant 0 : i32
    %c0_i32_0 = arith.constant 0 : i32
    return %arg0, %c0_i32 : i32, i32
  }
}

</mosaic_0001>

<llo_original>
// kernel: tpu_custom_call.1
$region0: #{tpu_custom_call.1}
  #allocation0 [shape = 'u32[]', space=smem, size = 0x4, offset = 0x4, fixed_abs, tag = 'smem constant byte address 0x4 - core index']
  #allocation1 [shape = 'u32[72,128]{1,0:T(1,128)}', space=vmem, size = 0x9000, scoped, tag = 'internal scratch']
  %s0 = inlined_call_operand.hbm [shape: f32[16,32], index: 0, kind: input, shape index: {}]
  %s1 = inlined_call_operand.hbm [shape: f32[32,128], index: 1, kind: input, shape index: {}]
  %s2 = inlined_call_operand.hbm [shape: f32[16,128], index: 2, kind: output, shape index: {}]
  %s3 = sld [smem:[#allocation0]]
  $region26: #{tpu_custom_call.1} parent=0
    _
  %s5 = ssub.s32 1, %s3
  %s6 = scalar_select 0, %s5, %s3
  $region1: #{tpu_custom_call.1} parent=0
    #allocation2 [shape = 'u8[8192]{0}', space=vmem, size = 0x2000, scoped, tag = 'input window, operand 0, single buffered']
    #allocation3 [shape = 's32[1]{0}', space=sflag, size = 0x4, scoped, tag = 'scoped memory for tpu_custom_call.1']
    #allocation4 [shape = 's32[1]{0}', space=sflag, size = 0x4, scoped, tag = 'scoped memory for tpu_custom_call.1']
    #allocation5 [shape = 'u8[16384]{0}', space=vmem, size = 0x4000, scoped, tag = 'input window, operand 1, single buffered']
    #allocation6 [shape = 's32[1]{0}', space=sflag, size = 0x4, scoped, tag = 'scoped memory for tpu_custom_call.1']
    #allocation7 [shape = 'u8[8192]{0}', space=vmem, size = 0x2000, scoped, tag = 'output window, operand 0, single buffered']
    %7 = vsyncpa [#allocation3], 0
    %8 = vsyncpa [#allocation6], 0
    %9 = vsyncpa [#allocation4], 0
    // Predicated region
    $region2: #{tpu_custom_call.1} parent=1 // pred_check
      _
    $region3: #{tpu_custom_call.1} parent=1 // pred_check_branch
      %11 = sbr.rel (0) target = $region5
    $region4: #{tpu_custom_call.1} parent=1 // pred_region
      %13 = vsyncadd [#allocation3], 0
      %s14 = sshll.u32 %s0, 4
      %s15 = int_to_ptr.hbm [resolvable:$true] %s14
      %s16 = sshll.u32 [#allocation2], 4
      %s17 = int_to_ptr.vmem [resolvable:$true] %s16
      %22 = dma.hbm_to_vmem [thread:$0]  %s15, 256, %s17, [#allocation3], 128, 128, 8
    $region5: #{tpu_custom_call.1} parent=1 // pred_fallthru
      _
    // Predicated region
    $region6: #{tpu_custom_call.1} parent=1 // pred_check
      _
    $region7: #{tpu_custom_call.1} parent=1 // pred_check_branch
      %24 = sbr.rel (0) target = $region9
    $region8: #{tpu_custom_call.1} parent=1 // pred_region
      %26 = vsyncadd [#allocation6], 0
      %s27 = sshll.u32 %s1, 4
      %s28 = int_to_ptr.hbm [resolvable:$true] %s27
      %s29 = sshll.u32 [#allocation5], 4
      %s30 = int_to_ptr.vmem [resolvable:$true] %s29
      %35 = dma.hbm_to_vmem [thread:$0]  %s28, 512, %s30, [#allocation6], 128, 128, 8
    $region9: #{tpu_custom_call.1} parent=1 // pred_fallthru
      _
    // Predicated region
    $region10: #{tpu_custom_call.1} parent=1 // pred_check
      _
    $region11: #{tpu_custom_call.1} parent=1 // pred_check_branch
      %37 = sbr.rel (0) target = $region13
    $region12: #{tpu_custom_call.1} parent=1 // pred_region
      %39 = dma.done [#allocation3], 256
    $region13: #{tpu_custom_call.1} parent=1 // pred_fallthru
      _
    // Predicated region
    $region14: #{tpu_custom_call.1} parent=1 // pred_check
      _
    $region15: #{tpu_custom_call.1} parent=1 // pred_check_branch
      %41 = sbr.rel (0) target = $region17
    $region16: #{tpu_custom_call.1} parent=1 // pred_region
      %43 = dma.done [#allocation6], 512
    $region17: #{tpu_custom_call.1} parent=1 // pred_fallthru
      _
    %v44 = vld [vmem:[#allocation2] sm:$0xff]
    %v45 = vld [vmem:[#allocation2 + $0x8] sm:$0xff]
    %v46 = vld [vmem:[#allocation5] sm:$0xff]
    %v47 = vld [vmem:[#allocation5 + $0x8] sm:$0xff]
    %v48 = vld [vmem:[#allocation5 + $0x10] sm:$0xff]
    %v49 = vld [vmem:[#allocation5 + $0x18] sm:$0xff]
    %vm50 = vcmask 261120
    %v52 = vsel %vm50, %v44, 0
    %v55 = vsel %vm50, %v45, 0
    %57 = vmatpush.msra.mxu0 0.0
    %58 = vmatpush.msra.mxu0 0.0
    %59 = vmatpush.msra.mxu0 0.0
    %60 = vmatpush.msra.mxu0 0.0
    %61 = vmatpush.msra.mxu0 0.0
    %62 = vmatpush.msra.mxu0 0.0
    %63 = vmatpush.msra.mxu0 0.0
    %64 = vmatpush.msra.mxu0 0.0
    %65 = vmatpush.msra.mxu0 0.0
    %66 = vmatpush.msra.mxu0 0.0
    %67 = vmatpush.msra.mxu0 0.0
    %68 = vmatpush.msra.mxu0 0.0
    %69 = vmatpush.msra.mxu0 %v49
    %70 = vmatpush.msra.mxu0 %v48
    %71 = vmatpush.msra.mxu0 %v47
    %72 = vmatpush.msra.mxu0 %v46
    %73 = vmatmul.f32.gmra.mxu0 %v52
    %v74 = vpop.f32.mrf.mxu0
    %v75 = vadd.f32 0.0, %v74
    %76 = vmatmul.f32.gmra.mxu0 %v55
    %v77 = vpop.f32.mrf.mxu0
    %v78 = vadd.f32 0.0, %v77
    %79 = vdwg.mxu0
    %80 = vst [vmem:[#allocation7] sm:$0xff] %v75
    %81 = vst [vmem:[#allocation7 + $0x8] sm:$0xff] %v78
    // Predicated region
    $region18: #{tpu_custom_call.1} parent=1 // pred_check
      _
    $region19: #{tpu_custom_call.1} parent=1 // pred_check_branch
      %83 = sbr.rel (0) target = $region21
    $region20: #{tpu_custom_call.1} parent=1 // pred_region
      %85 = vsyncadd [#allocation4], 0
      %s86 = sshll.u32 [#allocation7], 4
      %s87 = int_to_ptr.vmem [resolvable:$true] %s86
      %s88 = sshll.u32 %s2, 4
      %s89 = int_to_ptr.hbm [resolvable:$true] %s88
      %94 = dma.vmem_to_hbm [thread:$0]  %s87, 256, %s89, [#allocation4], 128, 128, 8
    $region21: #{tpu_custom_call.1} parent=1 // pred_fallthru
      _
    // Predicated region
    $region22: #{tpu_custom_call.1} parent=1 // pred_check
      _
    $region23: #{tpu_custom_call.1} parent=1 // pred_check_branch
      %96 = sbr.rel (0) target = $region25
    $region24: #{tpu_custom_call.1} parent=1 // pred_region
      %98 = dma.done [#allocation4], 256
    $region25: #{tpu_custom_call.1} parent=1 // pred_fallthru
      _
    %99 = vsyncpa [#allocation3], 1
    %100 = vsyncpa [#allocation6], 1
    %101 = vsyncpa [#allocation4], 1

// kernel: tpu_custom_call.1
$region0: #{tpu_custom_call.1}
  #allocation0 [shape = 'u32[]', space=smem, size = 0x4, offset = 0x4, fixed_abs, tag = 'smem constant byte address 0x4 - core index']
  #allocation1 [shape = 'u32[72,128]{1,0:T(1,128)}', space=vmem, size = 0x9000, scoped, tag = 'internal scratch']
  %s0 = inlined_call_operand.hbm [shape: f32[16,32], index: 0, kind: input, shape index: {}]
  %s1 = inlined_call_operand.hbm [shape: f32[32,128], index: 1, kind: input, shape index: {}]
  %s2 = inlined_call_operand.hbm [shape: f32[16,128], index: 2, kind: output, shape index: {}]
  %s3 = sld [smem:[#allocation0]]
  $region26: #{tpu_custom_call.1} parent=0
    _
  %s5 = ssub.s32 1, %s3
  %s6 = scalar_select 0, %s5, %s3
  $region1: #{tpu_custom_call.1} parent=0
    #allocation2 [shape = 'u8[8192]{0}', space=vmem, size = 0x2000, scoped, tag = 'input window, operand 0, single buffered']
    #allocation3 [shape = 's32[1]{0}', space=sflag, size = 0x4, scoped, tag = 'scoped memory for tpu_custom_call.1']
    #allocation4 [shape = 's32[1]{0}', space=sflag, size = 0x4, scoped, tag = 'scoped memory for tpu_custom_call.1']
    #allocation5 [shape = 'u8[16384]{0}', space=vmem, size = 0x4000, scoped, tag = 'input window, operand 1, single buffered']
    #allocation6 [shape = 's32[1]{0}', space=sflag, size = 0x4, scoped, tag = 'scoped memory for tpu_custom_call.1']
    #allocation7 [shape = 'u8[8192]{0}', space=vmem, size = 0x2000, scoped, tag = 'output window, operand 0, single buffered']
    %7 = vsyncpa [#allocation3], 0
    %8 = vsyncpa [#allocation6], 0
    %9 = vsyncpa [#allocation4], 0
    // Predicated region
    $region2: #{tpu_custom_call.1} parent=1 // pred_check
      _
    $region3: #{tpu_custom_call.1} parent=1 // pred_check_branch
      %11 = sbr.rel (0) target = $region5
    $region4: #{tpu_custom_call.1} parent=1 // pred_region
      %13 = vsyncadd [#allocation3], 0
      %s14 = sshll.u32 %s0, 4
      %s15 = int_to_ptr.hbm [resolvable:$true] %s14
      %s16 = sshll.u32 [#allocation2], 4
      %s17 = int_to_ptr.vmem [resolvable:$true] %s16
      %22 = dma.hbm_to_vmem [thread:$0]  %s15, 256, %s17, [#allocation3], 128, 128, 8
    $region5: #{tpu_custom_call.1} parent=1 // pred_fallthru
      _
    // Predicated region
    $region6: #{tpu_custom_call.1} parent=1 // pred_check
      _
    $region7: #{tpu_custom_call.1} parent=1 // pred_check_branch
      %24 = sbr.rel (0) target = $region9
    $region8: #{tpu_custom_call.1} parent=1 // pred_region
      %26 = vsyncadd [#allocation6], 0
      %s27 = sshll.u32 %s1, 4
      %s28 = int_to_ptr.hbm [resolvable:$true] %s27
      %s29 = sshll.u32 [#allocation5], 4
      %s30 = int_to_ptr.vmem [resolvable:$true] %s29
      %35 = dma.hbm_to_vmem [thread:$0]  %s28, 512, %s30, [#allocation6], 128, 128, 8
    $region9: #{tpu_custom_call.1} parent=1 // pred_fallthru
      _
    // Predicated region
    $region10: #{tpu_custom_call.1} parent=1 // pred_check
      _
    $region11: #{tpu_custom_call.1} parent=1 // pred_check_branch
      %37 = sbr.rel (0) target = $region13
    $region12: #{tpu_custom_call.1} parent=1 // pred_region
      %39 = dma.done [#allocation3], 256
    $region13: #{tpu_custom_call.1} parent=1 // pred_fallthru
      _
    // Predicated region
    $region14: #{tpu_custom_call.1} parent=1 // pred_check
      _
    $region15: #{tpu_custom_call.1} parent=1 // pred_check_branch
      %41 = sbr.rel (0) target = $region17
    $region16: #{tpu_custom_call.1} parent=1 // pred_region
      %43 = dma.done [#allocation6], 512
    $region17: #{tpu_custom_call.1} parent=1 // pred_fallthru
      _
    %v44 = vld [vmem:[#allocation2] sm:$0xff]
    %v45 = vld [vmem:[#allocation2 + $0x8] sm:$0xff]
    %v46 = vld [vmem:[#allocation5] sm:$0xff]
    %v47 = vld [vmem:[#allocation5 + $0x8] sm:$0xff]
    %v48 = vld [vmem:[#allocation5 + $0x10] sm:$0xff]
    %v49 = vld [vmem:[#allocation5 + $0x18] sm:$0xff]
    %vm50 = vcmask 261120
    %v52 = vsel %vm50, %v44, 0
    %v55 = vsel %vm50, %v45, 0
    %57 = vmatpush.msra.mxu0 0.0
    %58 = vmatpush.msra.mxu0 0.0
    %59 = vmatpush.msra.mxu0 0.0
    %60 = vmatpush.msra.mxu0 0.0
    %61 = vmatpush.msra.mxu0 0.0
    %62 = vmatpush.msra.mxu0 0.0
    %63 = vmatpush.msra.mxu0 0.0
    %64 = vmatpush.msra.mxu0 0.0
    %65 = vmatpush.msra.mxu0 0.0
    %66 = vmatpush.msra.mxu0 0.0
    %67 = vmatpush.msra.mxu0 0.0
    %68 = vmatpush.msra.mxu0 0.0
    %69 = vmatpush.msra.mxu0 %v49
    %70 = vmatpush.msra.mxu0 %v48
    %71 = vmatpush.msra.mxu0 %v47
    %72 = vmatpush.msra.mxu0 %v46
    %73 = vmatmul.f32.gmra.mxu0 %v52
    %v74 = vpop.f32.mrf.mxu0
    %v75 = vadd.f32 0.0, %v74
    %76 = vmatmul.f32.gmra.mxu0 %v55
    %v77 = vpop.f32.mrf.mxu0
    %v78 = vadd.f32 0.0, %v77
    %79 = vdwg.mxu0
    %80 = vst [vmem:[#allocation7] sm:$0xff] %v75
    %81 = vst [vmem:[#allocation7 + $0x8] sm:$0xff] %v78
    // Predicated region
    $region18: #{tpu_custom_call.1} parent=1 // pred_check
      _
    $region19: #{tpu_custom_call.1} parent=1 // pred_check_branch
      %83 = sbr.rel (0) target = $region21
    $region20: #{tpu_custom_call.1} parent=1 // pred_region
      %85 = vsyncadd [#allocation4], 0
      %s86 = sshll.u32 [#allocation7], 4
      %s87 = int_to_ptr.vmem [resolvable:$true] %s86
      %s88 = sshll.u32 %s2, 4
      %s89 = int_to_ptr.hbm [resolvable:$true] %s88
      %94 = dma.vmem_to_hbm [thread:$0]  %s87, 256, %s89, [#allocation4], 128, 128, 8
    $region21: #{tpu_custom_call.1} parent=1 // pred_fallthru
      _
    // Predicated region
    $region22: #{tpu_custom_call.1} parent=1 // pred_check
      _
    $region23: #{tpu_custom_call.1} parent=1 // pred_check_branch
      %96 = sbr.rel (0) target = $region25
    $region24: #{tpu_custom_call.1} parent=1 // pred_region
      %98 = dma.done [#allocation4], 256
    $region25: #{tpu_custom_call.1} parent=1 // pred_fallthru
      _
    %99 = vsyncpa [#allocation3], 1
    %100 = vsyncpa [#allocation6], 1
    %101 = vsyncpa [#allocation4], 1

</llo_original>
